<compile_context>
chip_gen: v7x
topology: tpu7x:2x2x1
jax: 0.10.0
libtpu: 0.0.40
codegen_flags: <defaults>
</compile_context>

<pallas_src>
import math

import jax
import jax.numpy as jnp
from jax.experimental import pallas as pl
from jax.experimental.pallas import tpu as pltpu


# ------------------------------ fused kernel ---------------------------------

def _focus_attention_kernel(p_ref, key_ref, ctx_ref):
    """Per-grid-step FocusAttention: streams a (BB, S, H) key tile, writes (BB, H) context.

    p_ref holds the pre-folded query direction p = (q_eff @ Wk^T) / sqrt(H) (shape (1, H)),
    computed once in the wrapper. The bias term q.bk cancels in the softmax.
    """
    key = key_ref[...].astype(jnp.float32)        # (BB, S, H) -- the only streamed operand
    p = p_ref[0, :].astype(jnp.float32)           # (H,)       -- resident, constant index_map

    # scores = key @ p  as a VPU broadcast-multiply + lane reduce (no M=1 MXU GEMV)
    scores = jnp.sum(key * p, axis=-1)            # (BB, S)

    # TODO(synk): masked_fill(mask, -inf) not implemented (mask=None default).

    # numerically-stable softmax over the sequence axis; denominator via EUP reciprocal
    m = jnp.max(scores, axis=-1, keepdims=True)
    e = jnp.exp(scores - m)
    attn = e * pl.reciprocal(jnp.sum(e, axis=-1, keepdims=True), approx=True)  # (BB, S)

    # context = att @ value with value = key  -> weighted sum over S (VPU + sublane reduce)
    ctx = jnp.sum(attn[:, :, None] * key, axis=1)  # (BB, H)
    ctx_ref[...] = ctx.astype(ctx_ref.dtype)


# -------------------------------- wrapper -------------------------------------

def _pick_block_b(bsz, target=8):
    """Batch block size: full batch if small, else a divisor of bsz that keeps (8,*) tiling legal."""
    if bsz <= target:
        return bsz
    for bb in range(min(target, bsz), 0, -1):
        if bsz % bb == 0 and bb % 8 == 0:
            return bb
    return bsz  # fall back to full batch (block equals full extent -> always legal)


def focus_attention(key, value, params, *, use_over_param=False, block_b=8):
    """JAX/Pallas equivalent of FocusAttention.forward(key, value).

    `value` is accepted for signature parity with the PyTorch module but is unused:
    the module sets `value = key` before calling attention.
    """
    del value
    bsz, seq_len, H = key.shape
    scale = 1.0 / math.sqrt(H)

    # --- batch-invariant prework, hoisted out of the kernel (runs once, tiny) ---
    q = params["query"].astype(jnp.float32)                      # (1, H)
    if use_over_param:
        h = q @ params["wl1_t"] + params["bl1"]                  # Overparam l1
        c, f = h[:, :H], h[:, H:]
        q = jax.nn.sigmoid(f) * jnp.tanh(c)

    # Fold q through the key projection: p = Wk @ q^T (as a row vector), scale folded in.
    # The projection bias contributes a per-row constant (q . bk) that cancels in softmax.
    p = (q @ params["wk_t"].T) * scale                           # (1, H)
    p = p.astype(jnp.float32)

    bb = _pick_block_b(bsz, block_b)
    grid = (bsz // bb,)

    ctx = pl.pallas_call(
        _focus_attention_kernel,
        out_shape=jax.ShapeDtypeStruct((bsz, H), key.dtype),
        grid=grid,
        in_specs=[
            pl.BlockSpec((1, H), lambda b: (0, 0)),              # folded query dir (resident)
            pl.BlockSpec((bb, seq_len, H), lambda b: (b, 0, 0)), # streamed key tile
        ],
        out_specs=pl.BlockSpec((bb, H), lambda b: (b, 0)),       # 2-D, sublane/lane-dense
        compiler_params=pltpu.CompilerParams(
            dimension_semantics=("parallel",),
        ),
    )(p, key)

    # Second module output: query.transpose(0, 2) -- out of range for a 2-D (1, H) tensor
    # in torch; return the 2-D transpose instead (see TODO at top of file).
    query_t = params["query"].T
    return ctx, query_t


# ------------------------------- reference ------------------------------------

def reference(key, params, *, use_over_param=False):
    bsz, S, H = key.shape
    q = params["query"]
    if use_over_param:
        h = q @ params["wl1_t"] + params["bl1"]
        c, f = h[:, :H], h[:, H:]
        q = jax.nn.sigmoid(f) * jnp.tanh(c)
    kf = key @ params["wk_t"] + params["bk"]
    att = jnp.einsum("qh,bsh->bs", q, kf) / math.sqrt(H)
    att = jax.nn.softmax(att, axis=1)
    ctx = jnp.einsum("bs,bsh->bh", att, key)           # value = key
    return ctx, params["query"].T


# ---------------------------------- main ---------------------------------------

if __name__ == "__main__":
    bsz, seq_len, n_hidden = 2, 8, 32

    root = jax.random.PRNGKey(0)
    ks = jax.random.split(root, 8)

    def w(k, shape, s=0.1):
        return (s * jax.random.normal(k, shape)).astype(jnp.float32)

    # torch initializes self.query to zeros; small random values exercise the attention path.
    # Linear weights are passed pre-transposed as (in_features, out_features).
    params = {
        "query": w(ks[0], (1, n_hidden)),
        "wk_t": w(ks[1], (n_hidden, n_hidden)),
        "bk": w(ks[2], (1, n_hidden)),
        "wl1_t": w(ks[3], (n_hidden, 2 * n_hidden)),
        "bl1": w(ks[4], (1, 2 * n_hidden)),
    }

    key_in = jax.random.normal(ks[5], (bsz, seq_len, n_hidden), dtype=jnp.float32)
    value_in = jax.random.normal(ks[6], (bsz, seq_len, n_hidden), dtype=jnp.float32)  # unused by module

    for flag in (False, True):
        ctx, q_t = focus_attention(key_in, value_in, params, use_over_param=flag)
        jax.block_until_ready((ctx, q_t))
        ref_ctx, ref_q_t = reference(key_in, params, use_over_param=flag)
        assert jnp.allclose(ctx, ref_ctx, atol=2e-3, rtol=2e-3), f"context mismatch (over_param={flag})"
        assert jnp.allclose(q_t, ref_q_t), f"query transpose mismatch (over_param={flag})"

    print("KERNEL_OK")
</pallas_src>

<mosaic_0001>
module attributes {stable_mosaic.version = 11 : i64} {
  func.func @_focus_attention_kernel(%arg0: i32, %arg1: memref<1x32xf32, #tpu.memory_space<vmem>>, %arg2: memref<2x8x32xf32, #tpu.memory_space<vmem>>, %arg3: memref<2x32xf32, #tpu.memory_space<vmem>>) attributes {dimension_semantics = [#tpu.dimension_semantics<parallel>], iteration_bounds = array<i64: 1>, scalar_prefetch = 0 : i64, scratch_operands = 0 : i64, tpu.core_type = #tpu.core_type<tc>, window_params = [{pipeline_mode = #tpu.pipeline_mode<synchronous>, transform_indices = @transform_0, window_bounds = array<i64: 1, 32>}, {transform_indices = @transform_1, window_bounds = array<i64: 2, 8, 32>}, {transform_indices = @transform_2, window_bounds = array<i64: 2, 32>}]} {
    %c0 = arith.constant 0 : index
    %c0_0 = arith.constant 0 : index
    %c0_1 = arith.constant 0 : index
    %0 = vector.load %arg2[%c0, %c0_0, %c0_1] : memref<2x8x32xf32, #tpu.memory_space<vmem>>, vector<2x8x32xf32>
    %c0_2 = arith.constant 0 : index
    %c0_3 = arith.constant 0 : index
    %1 = vector.load %arg1[%c0_2, %c0_3] : memref<1x32xf32, #tpu.memory_space<vmem>>, vector<1x32xf32>
    %2 = vector.shape_cast %1 : vector<1x32xf32> to vector<32xf32>
    %3 = vector.shape_cast %2 : vector<32xf32> to vector<1x1x32xf32>
    %4 = vector.broadcast %3 : vector<1x1x32xf32> to vector<2x8x32xf32>
    %5 = arith.mulf %0, %4 : vector<2x8x32xf32>
    %cst = arith.constant dense<0.000000e+00> : vector<2x8xf32>
    %6 = vector.multi_reduction <add>, %5, %cst [2] : vector<2x8x32xf32> to vector<2x8xf32>
    %cst_4 = arith.constant dense<0xFF800000> : vector<2xf32>
    %7 = vector.multi_reduction <maximumf>, %6, %cst_4 [1] : vector<2x8xf32> to vector<2xf32>
    %8 = vector.shape_cast %7 : vector<2xf32> to vector<2x1xf32>
    %9 = vector.broadcast %8 : vector<2x1xf32> to vector<2x8xf32>
    %10 = arith.subf %6, %9 : vector<2x8xf32>
    %11 = math.exp %10 : vector<2x8xf32>
    %cst_5 = arith.constant dense<0.000000e+00> : vector<2xf32>
    %12 = vector.multi_reduction <add>, %11, %cst_5 [1] : vector<2x8xf32> to vector<2xf32>
    %13 = vector.shape_cast %12 : vector<2xf32> to vector<2x1xf32>
    %14 = tpu.reciprocal %13 {approx = true} : vector<2x1xf32> -> vector<2x1xf32>
    %15 = vector.broadcast %14 : vector<2x1xf32> to vector<2x8xf32>
    %16 = arith.mulf %11, %15 : vector<2x8xf32>
    %17 = vector.shape_cast %16 : vector<2x8xf32> to vector<2x8x1xf32>
    %18 = vector.broadcast %17 : vector<2x8x1xf32> to vector<2x8x32xf32>
    %19 = arith.mulf %18, %0 : vector<2x8x32xf32>
    %cst_6 = arith.constant dense<0.000000e+00> : vector<2x32xf32>
    %20 = vector.multi_reduction <add>, %19, %cst_6 [1] : vector<2x8x32xf32> to vector<2x32xf32>
    %c0_7 = arith.constant 0 : index
    %c0_8 = arith.constant 0 : index
    %21 = vector.load %arg3[%c0_7, %c0_8] : memref<2x32xf32, #tpu.memory_space<vmem>>, vector<2x32xf32>
    tpu.vector_store %arg3[%c0_7, %c0_8], %20 {strides = array<i32>} : memref<2x32xf32, #tpu.memory_space<vmem>>, vector<2x32xf32>,
    return
  }
  func.func @transform_0(%arg0: i32) -> (i32, i32) {
    %c0_i32 = arith.constant 0 : i32
    %c0_i32_0 = arith.constant 0 : i32
    %c0_i32_1 = arith.constant 0 : i32
    return %c0_i32, %c0_i32_0 : i32, i32
  }
  func.func @transform_1(%arg0: i32) -> (i32, i32, i32) {
    %c0_i32 = arith.constant 0 : i32
    %c0_i32_0 = arith.constant 0 : i32
    %c0_i32_1 = arith.constant 0 : i32
    return %arg0, %c0_i32, %c0_i32_0 : i32, i32, i32
  }
  func.func @transform_2(%arg0: i32) -> (i32, i32) {
    %c0_i32 = arith.constant 0 : i32
    %c0_i32_0 = arith.constant 0 : i32
    return %arg0, %c0_i32 : i32, i32
  }
}

</mosaic_0001>

<llo_original>
// kernel: tpu_custom_call.1
$region0: #{tpu_custom_call.1}
  #allocation0 [shape = 'u32[]', space=smem, size = 0x4, offset = 0x4, fixed_abs, tag = 'smem constant byte address 0x4 - core index']
  #allocation1 [shape = 'u32[144,128]{1,0:T(1,128)}', space=vmem, size = 0x12000, scoped, tag = 'internal scratch']
  %s0 = inlined_call_operand.hbm [shape: f32[1,32], index: 0, kind: input, shape index: {}]
  %s1 = inlined_call_operand.hbm [shape: f32[2,8,32], index: 1, kind: input, shape index: {}]
  %s2 = inlined_call_operand.hbm [shape: f32[2,32], index: 2, kind: output, shape index: {}]
  %s3 = sld [smem:[#allocation0]]
  $region26: #{tpu_custom_call.1} parent=0
    _
  %s5 = ssub.s32 1, %s3
  %s6 = scalar_select 0, %s5, %s3
  $region1: #{tpu_custom_call.1} parent=0
    #allocation2 [shape = 'u8[512]{0}', space=vmem, size = 0x400, scoped, tag = 'input window, operand 0, single buffered']
    #allocation3 [shape = 's32[1]{0}', space=sflag, size = 0x4, scoped, tag = 'scoped memory for tpu_custom_call.1']
    #allocation4 [shape = 's32[1]{0}', space=sflag, size = 0x4, scoped, tag = 'scoped memory for tpu_custom_call.1']
    #allocation5 [shape = 'u8[8192]{0}', space=vmem, size = 0x2000, scoped, tag = 'input window, operand 1, single buffered']
    #allocation6 [shape = 's32[1]{0}', space=sflag, size = 0x4, scoped, tag = 'scoped memory for tpu_custom_call.1']
    #allocation7 [shape = 'u8[1024]{0}', space=vmem, size = 0x400, scoped, tag = 'output window, operand 0, single buffered']
    %7 = vsyncpa [#allocation3], 0
    %8 = vsyncpa [#allocation6], 0
    %9 = vsyncpa [#allocation4], 0
    // Predicated region
    $region2: #{tpu_custom_call.1} parent=1 // pred_check
      _
    $region3: #{tpu_custom_call.1} parent=1 // pred_check_branch
      %11 = sbr.rel (0) target = $region5
    $region4: #{tpu_custom_call.1} parent=1 // pred_region
      %s13 = ssub.s32 16, 16
      %14 = vsyncadd [#allocation3], %s13
      %s16 = sshll.u32 [#allocation2], 4
      %s17 = int_to_ptr.vmem [resolvable:$true] %s16
      %19 = dma.hbm_to_vmem [thread:$0]  %s0, 16, %s17, [#allocation3]
    $region5: #{tpu_custom_call.1} parent=1 // pred_fallthru
      _
    // Predicated region
    $region6: #{tpu_custom_call.1} parent=1 // pred_check
      _
    $region7: #{tpu_custom_call.1} parent=1 // pred_check_branch
      %21 = sbr.rel (0) target = $region9
    $region8: #{tpu_custom_call.1} parent=1 // pred_region
      %s23 = ssub.s32 256, 256
      %24 = vsyncadd [#allocation6], %s23
      %s25 = sshll.u32 [#allocation5], 4
      %s26 = int_to_ptr.vmem [resolvable:$true] %s25
      %31 = dma.hbm_to_vmem [thread:$0]  %s1, 256, %s26, [#allocation6], 128, 128, 8
    $region9: #{tpu_custom_call.1} parent=1 // pred_fallthru
      _
    // Predicated region
    $region10: #{tpu_custom_call.1} parent=1 // pred_check
      _
    $region11: #{tpu_custom_call.1} parent=1 // pred_check_branch
      %33 = sbr.rel (0) target = $region13
    $region12: #{tpu_custom_call.1} parent=1 // pred_region
      %34 = dma.done [#allocation3], 16
    $region13: #{tpu_custom_call.1} parent=1 // pred_fallthru
      _
    // Predicated region
    $region14: #{tpu_custom_call.1} parent=1 // pred_check
      _
    $region15: #{tpu_custom_call.1} parent=1 // pred_check_branch
      %36 = sbr.rel (0) target = $region17
    $region16: #{tpu_custom_call.1} parent=1 // pred_region
      %37 = dma.done [#allocation6], 256
    $region17: #{tpu_custom_call.1} parent=1 // pred_fallthru
      _
    %v38 = vld [vmem:[#allocation5] sm:$0xff]
    %v39 = vld [vmem:[#allocation5 + $0x8] sm:$0xff]
    %v40 = vld [vmem:[#allocation2] sm:$0x1]
    %v42 = vlaneseq
    %v43 = vshrl.u32 %v42, 7
    %v44 = vsub.s32 0, %v43
    %v45 = vrot.slane %v40, %v44
    %v47 = vmul.f32 %v38, %v45
    %v48 = vmul.f32 %v39, %v45
    %vm49 = vcmask 261120
    %v50 = vsel %vm49, %v47, 0.0
    %51 = vadd.xlane.f32.xlu0 %v50
    %v52 = vpop.xlane.xlu0 %51
    %v53 = vsel %vm49, %v48, 0.0
    %54 = vadd.xlane.f32.xlu0 %v53
    %v55 = vpop.xlane.xlu0 %54
    %v58 = vlaneseq
    %v59 = vand.u32 %v58, 127
    %v60 = vlaneseq
    %v61 = vshrl.u32 %v60, 7
    %v62 = vsub.s32 %v59, %v61
    %v63 = vrot.slane %v52, %v62
    %v64 = vlaneseq
    %v65 = vshrl.u32 %v64, 7
    %v66 = vsub.s32 %v59, %v65
    %v67 = vrot.slane %v55, %v66
    %vm68 = vcmask 1041409
    %v69 = vsel %vm68, %v67, %v63
    %vm71 = vcmask 58368
    %v72 = vsel %vm71, %v69, -inf
    %73 = vmax.xlane.f32.xlu0 %v72
    %v74 = vpop.xlane.xlu0 %73
    %v76 = vlaneseq
    %v77 = vshrl.u32 %v76, 7
    %v78 = vsub.s32 0, %v77
    %v79 = vrot.slane %v74, %v78
    %v80 = vlaneseq
    %v81 = vshrl.u32 %v80, 7
    %v82 = vsub.s32 1, %v81
    %v83 = vrot.slane %v74, %v82
    %v86 = vsub.f32 %v52, %v79
    %v87 = vsub.f32 %v55, %v83
    %v88 = vmul.f32 %v86, 1.442695
    %v89 = vpow.pop %v88
    %v90 = vmul.f32 %v87, 1.442695
    %v91 = vpow.pop %v90
    %94 = vset.pattern.permute.xlu0 0
    %95 = vperm.xlu0 %94, %v89
    %v96 = vpop.permute.xlu0 %95
    %97 = vset.pattern.permute.xlu0 0
    %98 = vperm.xlu0 %97, %v91
    %v99 = vpop.permute.xlu0 %98
    %v100 = vlaneseq
    %v101 = vshrl.u32 %v100, 7
    %v102 = vsub.s32 %v59, %v101
    %v103 = vrot.slane %v96, %v102
    %v104 = vlaneseq
    %v105 = vshrl.u32 %v104, 7
    %v106 = vsub.s32 %v59, %v105
    %v107 = vrot.slane %v99, %v106
    %v108 = vsel %vm68, %v107, %v103
    %v110 = vsel %vm71, %v108, 0.0
    %111 = vadd.xlane.f32.xlu0 %v110
    %v112 = vpop.xlane.xlu0 %111
    %v113 = vrcp.pop %v112
    %v115 = vlaneseq
    %v116 = vshrl.u32 %v115, 7
    %v117 = vsub.s32 0, %v116
    %v118 = vrot.slane %v113, %v117
    %v119 = vlaneseq
    %v120 = vshrl.u32 %v119, 7
    %v121 = vsub.s32 1, %v120
    %v122 = vrot.slane %v113, %v121
    %v125 = vmul.f32 %v89, %v118
    %v126 = vmul.f32 %v91, %v122
    %128 = vset.pattern.permute.xlu0 0
    %129 = vperm.xlu0 %128, %v125
    %v130 = vpop.permute.xlu0 %129
    %133 = vset.pattern.permute.xlu0 0
    %134 = vperm.xlu0 %133, %v126
    %v135 = vpop.permute.xlu0 %134
    %v137 = vmul.f32 %v130, %v38
    %v138 = vmul.f32 %v135, %v39
    %v139 = vsel %vm49, %v137, 0.0
    %v140 = vrot.slane %v139, 4
    %v141 = vadd.f32 %v139, %v140
    %v142 = vrot.slane %v141, 2
    %v143 = vadd.f32 %v141, %v142
    %v144 = vrot.slane %v143, 1
    %v145 = vadd.f32 %v143, %v144
    %v146 = vsel %vm49, %v138, 0.0
    %v147 = vrot.slane %v146, 4
    %v148 = vadd.f32 %v146, %v147
    %v149 = vrot.slane %v148, 2
    %v150 = vadd.f32 %v148, %v149
    %v151 = vrot.slane %v150, 1
    %v152 = vadd.f32 %v150, %v151
    %v155 = vsel %vm68, %v152, %v145
    %vm157 = vcmask 254976
    %158 = vst.msk [vmem:[#allocation7] sm:$0x3] %vm157, %v155
    // Predicated region
    $region18: #{tpu_custom_call.1} parent=1 // pred_check
      _
    $region19: #{tpu_custom_call.1} parent=1 // pred_check_branch
      %160 = sbr.rel (0) target = $region21
    $region20: #{tpu_custom_call.1} parent=1 // pred_region
      %s162 = ssub.s32 32, 32
      %163 = vsyncadd [#allocation4], %s162
      %s165 = sshll.u32 [#allocation7], 4
      %s166 = int_to_ptr.vmem [resolvable:$true] %s165
      %168 = dma.vmem_to_hbm [thread:$0]  %s166, 32, %s2, [#allocation4]
    $region21: #{tpu_custom_call.1} parent=1 // pred_fallthru
      _
    // Predicated region
    $region22: #{tpu_custom_call.1} parent=1 // pred_check
      _
    $region23: #{tpu_custom_call.1} parent=1 // pred_check_branch
      %170 = sbr.rel (0) target = $region25
    $region24: #{tpu_custom_call.1} parent=1 // pred_region
      %171 = dma.done [#allocation4], 32
    $region25: #{tpu_custom_call.1} parent=1 // pred_fallthru
      _
    %172 = vsyncpa [#allocation3], 1
    %173 = vsyncpa [#allocation6], 1
    %174 = vsyncpa [#allocation4], 1

</llo_original>
